<compile_context>
chip_gen: v6e
topology: v6e:2x2x1
jax: 0.10.0
libtpu: 0.0.40
codegen_flags: <defaults>
</compile_context>

<pallas_src>
import jax
import jax.numpy as jnp
from jax.experimental import pallas as pl
from jax.experimental.pallas import tpu as pltpu


def _embed_kernel(x_ref, w_ref, posb_ref, out_ref):
    # x_ref:    (tm, K)   bf16 — tm flattened patches of one batch element
    # w_ref:    (K, dim)  bf16 — grid-invariant, resident in VMEM
    # posb_ref: (tm, dim) f32  — positional embedding with bias folded in
    # out_ref:  (tm, dim) f32
    y = jnp.dot(x_ref[...], w_ref[...], preferred_element_type=jnp.float32)
    out_ref[...] = (y + posb_ref[...]).astype(out_ref.dtype)


def patchify_nchw(img, patch_size):
    """Rearrange 'b c (h p1) (w p2) -> b (h w) (p1 p2 c)' (pure layout)."""
    B, C, H, W = img.shape
    p1, p2 = patch_size
    hh, ww = H // p1, W // p2
    x = img.reshape(B, C, hh, p1, ww, p2)
    # -> (B, hh, ww, p1, p2, C): channel innermost, matching (p1 p2 c)
    x = jnp.transpose(x, (0, 2, 4, 3, 5, 1))
    return x.reshape(B, hh * ww, p1 * p2 * C)


def _row_tile(n, target):
    """Row tile that satisfies the (8,128) rule: full extent, or a multiple-of-8
    divisor of n no larger than `target` (so every block is full)."""
    if n <= target:
        return n
    for t in range(target - (target % 8), 7, -8):
        if n % t == 0:
            return t
    return n  # fall back to full extent (always legal)


def image_embedder(img, w, b, pos, *, patch_size, row_tile=256):
    """Forward pass. img is NCHW float32. Dropout p=0.0 -> identity."""
    dim = w.shape[-1]

    # Patchify in XLA; cast to bf16 first so the materialized patches tensor
    # (and the matmul operand reads) are half-width.
    patches = patchify_nchw(img.astype(jnp.bfloat16), patch_size)   # (B, N, K)
    B, N, K = patches.shape

    w_c = w.astype(jnp.bfloat16)                                     # (K, dim)
    pos_b = (pos.reshape(N, dim) + b.reshape(1, dim)).astype(jnp.float32)

    # Keep the contraction dim lane-aligned (zero rows contribute nothing).
    if K % 128 != 0:
        pad = 128 - (K % 128)
        patches = jnp.pad(patches, ((0, 0), (0, 0), (0, pad)))
        w_c = jnp.pad(w_c, ((0, pad), (0, 0)))
        K = K + pad

    tm = _row_tile(N, row_tile)
    # Row-tile axis outer, batch axis inner: pos tile index is constant over
    # the inner loop, so its re-fetch is skipped; weight is fully invariant.
    grid = (N // tm, B)

    out = pl.pallas_call(
        _embed_kernel,
        out_shape=jax.ShapeDtypeStruct((B, N, dim), jnp.float32),
        grid_spec=pltpu.PrefetchScalarGridSpec(
            num_scalar_prefetch=0,
            grid=grid,
            in_specs=[
                # Patches: one tm-row tile of one batch element per step.
                pl.BlockSpec((pl.Squeezed(), tm, K), lambda ji, bi: (bi, ji, 0)),
                # Weight: grid-invariant (fetched once, stays resident).
                pl.BlockSpec((K, dim), lambda ji, bi: (0, 0)),
                # pos(+bias): invariant across the inner batch axis.
                pl.BlockSpec((tm, dim), lambda ji, bi: (ji, 0)),
            ],
            out_specs=pl.BlockSpec((pl.Squeezed(), tm, dim),
                                   lambda ji, bi: (bi, ji, 0)),
        ),
        compiler_params=pltpu.CompilerParams(
            dimension_semantics=("parallel", "parallel")),
    )(patches, w_c, pos_b)
    return out


if __name__ == "__main__":
    # Small shapes consistent with the module:
    #   image_size=(16,16), patch_size=(8,8), input_dim=4, dim=32
    #   -> num_patches = 4, patch_dim = 4*8*8 = 256
    B, C = 2, 4
    image_size = (16, 16)
    patch_size = (8, 8)
    dim = 32
    num_patches = (image_size[0] // patch_size[0]) * (image_size[1] // patch_size[1])
    patch_dim = C * patch_size[0] * patch_size[1]

    key = jax.random.PRNGKey(0)
    k_img, k_w, k_b, k_pos = jax.random.split(key, 4)

    img = jax.random.normal(k_img, (B, C, *image_size), dtype=jnp.float32)
    # Deterministic synthetic parameters (Linear weight/bias + pos embedding).
    w = jax.random.normal(k_w, (patch_dim, dim), dtype=jnp.float32) * 0.02
    b = jax.random.normal(k_b, (dim,), dtype=jnp.float32) * 0.02
    pos = jax.random.normal(k_pos, (1, num_patches, dim), dtype=jnp.float32)

    out = image_embedder(img, w, b, pos, patch_size=patch_size)
    jax.block_until_ready(out)

    # Pure-JAX reference using the same bf16 operand cast (f32 accumulate), so
    # the check isolates kernel correctness from bf16 rounding of the inputs.
    p_ref = patchify_nchw(img.astype(jnp.bfloat16), patch_size).astype(jnp.float32)
    w_ref = w.astype(jnp.bfloat16).astype(jnp.float32)
    ref = p_ref @ w_ref + (pos.reshape(num_patches, dim) + b)[None]

    assert out.shape == (B, num_patches, dim)
    assert jnp.allclose(out, ref, atol=1e-3, rtol=1e-3), \
        float(jnp.max(jnp.abs(out - ref)))

    print("KERNEL_OK")
</pallas_src>

<mosaic_0001>
module attributes {stable_mosaic.version = 11 : i64} {
  func.func @_embed_kernel(%arg0: i32, %arg1: i32, %arg2: memref<1x4x256xbf16, #tpu.memory_space<vmem>>, %arg3: memref<256x32xbf16, #tpu.memory_space<vmem>>, %arg4: memref<4x32xf32, #tpu.memory_space<vmem>>, %arg5: memref<1x4x32xf32, #tpu.memory_space<vmem>>) attributes {dimension_semantics = [#tpu.dimension_semantics<parallel>, #tpu.dimension_semantics<parallel>], iteration_bounds = array<i64: 1, 2>, scalar_prefetch = 0 : i64, scratch_operands = 0 : i64, tpu.core_type = #tpu.core_type<tc>, window_params = [{transform_indices = @transform_0, window_bounds = array<i64: 1, 4, 256>}, {pipeline_mode = #tpu.pipeline_mode<synchronous>, transform_indices = @transform_1, window_bounds = array<i64: 256, 32>}, {transform_indices = @transform_2, window_bounds = array<i64: 4, 32>}, {transform_indices = @transform_3, window_bounds = array<i64: 1, 4, 32>}]} {
    %c0 = arith.constant 0 : index
    %c0_0 = arith.constant 0 : index
    %c0_1 = arith.constant 0 : index
    %0 = vector.load %arg2[%c0, %c0_0, %c0_1] : memref<1x4x256xbf16, #tpu.memory_space<vmem>>, vector<1x4x256xbf16>
    %1 = vector.shape_cast %0 : vector<1x4x256xbf16> to vector<4x256xbf16>
    %c0_2 = arith.constant 0 : index
    %c0_3 = arith.constant 0 : index
    %2 = vector.load %arg3[%c0_2, %c0_3] : memref<256x32xbf16, #tpu.memory_space<vmem>>, vector<256x32xbf16>
    %cst = arith.constant dense<0.000000e+00> : vector<4x32xf32>
    %3 = tpu.matmul %1, %2, %cst {dimension_numbers = #tpu.dot_dimension_numbers<[1], [0], [0], [1], [0, 0, 1, 1], [], []>} : vector<4x256xbf16>, vector<256x32xbf16>, vector<4x32xf32> -> vector<4x32xf32>
    %c0_4 = arith.constant 0 : index
    %c0_5 = arith.constant 0 : index
    %4 = vector.load %arg4[%c0_4, %c0_5] : memref<4x32xf32, #tpu.memory_space<vmem>>, vector<4x32xf32>
    %5 = arith.addf %3, %4 : vector<4x32xf32>
    %c0_6 = arith.constant 0 : index
    %c0_7 = arith.constant 0 : index
    %c0_8 = arith.constant 0 : index
    %6 = vector.load %arg5[%c0_6, %c0_7, %c0_8] : memref<1x4x32xf32, #tpu.memory_space<vmem>>, vector<1x4x32xf32>
    %7 = vector.shape_cast %6 : vector<1x4x32xf32> to vector<4x32xf32>
    %8 = vector.shape_cast %5 : vector<4x32xf32> to vector<1x4x32xf32>
    tpu.vector_store %arg5[%c0_6, %c0_7, %c0_8], %8 {strides = array<i32>} : memref<1x4x32xf32, #tpu.memory_space<vmem>>, vector<1x4x32xf32>,
    return
  }
  func.func @transform_0(%arg0: i32, %arg1: i32) -> (i32, i32, i32) {
    %c0_i32 = arith.constant 0 : i32
    %c0_i32_0 = arith.constant 0 : i32
    return %arg1, %arg0, %c0_i32 : i32, i32, i32
  }
  func.func @transform_1(%arg0: i32, %arg1: i32) -> (i32, i32) {
    %c0_i32 = arith.constant 0 : i32
    %c0_i32_0 = arith.constant 0 : i32
    %c0_i32_1 = arith.constant 0 : i32
    return %c0_i32, %c0_i32_0 : i32, i32
  }
  func.func @transform_2(%arg0: i32, %arg1: i32) -> (i32, i32) {
    %c0_i32 = arith.constant 0 : i32
    %c0_i32_0 = arith.constant 0 : i32
    return %arg0, %c0_i32 : i32, i32
  }
  func.func @transform_3(%arg0: i32, %arg1: i32) -> (i32, i32, i32) {
    %c0_i32 = arith.constant 0 : i32
    %c0_i32_0 = arith.constant 0 : i32
    return %arg1, %arg0, %c0_i32 : i32, i32, i32
  }
}

</mosaic_0001>

<llo_original>
// kernel: tpu_custom_call.1
$region0: #{tpu_custom_call.1}
  #allocation0 [shape = 'u32[]', space=smem, size = 0x4, offset = 0x4, fixed_abs, tag = 'smem constant byte address 0x4 - core index']
  #allocation1 [shape = 'u32[144,128]{1,0:T(1,128)}', space=vmem, size = 0x12000, scoped, tag = 'internal scratch']
  %s0 = inlined_call_operand.vmem [shape: bf16[2,4,256], index: 0, kind: input, shape index: {}]
  %s1 = inlined_call_operand.vmem [shape: bf16[256,32], index: 1, kind: input, shape index: {}]
  %s2 = inlined_call_operand.vmem [shape: f32[4,32], index: 2, kind: input, shape index: {}]
  %s3 = inlined_call_operand.hbm [shape: f32[2,4,32], index: 3, kind: output, shape index: {}]
  %s4 = sld [smem:[#allocation0]]
  $region45: #{tpu_custom_call.1} parent=0
    _
  %s6 = ssub.s32 1, %s4
  %s7 = scalar_select 0, %s6, %s4
  $region1: #{tpu_custom_call.1} parent=0
    #allocation2 [shape = 'u8[4096]{0}', space=vmem, size = 0x1000, scoped, tag = 'output window, operand 0']
    #allocation3 [shape = 's32[2]{0}', space=sflag, size = 0x8, scoped, tag = 'scoped memory for tpu_custom_call.1']
    %8 = vsyncpa [#allocation3], 0
    %s9 = scalar_lea.sflag [#allocation3], 1
    %10 = vsyncpa %s9, 0
    loop: start=0, step=1, limit=4
    $region2: #{tpu_custom_call.1} parent=1 // loop_pre_header
      _
    $region3: #{tpu_custom_call.1} parent=1 // loop_header
      %s12 = sphi 0, %s16
      %p13 = scmp.ge.s32.totalorder %s12, 4
      %s19 = sphi 0, %s31
      %s20 = sphi 0, %s27
      %s21 = sphi 0, %s19
      %s22 = sphi 0, %s20
      %s23 = sphi 0, %s21
      %s24 = sphi 0, %s22
      %s36 = sphi 0, %s38
      %s39 = sphi 0, %s36
      %s40 = sphi 0, %s39
      %s56 = sphi 0, %s40
      %s60 = sphi 0, %s60
      %s62 = sphi 0, %s60
      %s63 = sphi 0, %s62
      %s77 = sphi 0, %s63
      %s83 = sphi 0, %s85
      %s86 = sphi 0, %s83
      %s87 = sphi 0, %s86
      %s103 = sphi 0, %s87
      %s111 = sphi 0, %s113
      %s114 = sphi 0, %s111
      %s115 = sphi 0, %s114
      %s131 = sphi 0, %s115
    $region4: #{tpu_custom_call.1} parent=1 // loop_header_branch
      %15 = sbr.rel (%p13) target = $region8
    $region5: #{tpu_custom_call.1} parent=1 // loop_body
      %s17 = ssub.s32 %s12, 1
      %s18 = ssub.s32 %s12, 2
      %s25 = sadd.s32 1, %s20
      %p26 = scmp.ge.s32.totalorder %s25, 2
      %s27 = scalar_select %p26, 0, %s25
      %s28 = sadd.s32 1, %s19
      %s29 = scalar_select %p26, %s28, %s19
      %p30 = scmp.ge.s32.totalorder %s29, 1
      %s31 = scalar_select %p30, 0, %s29
      %s32 = ssub.s32 %s20, %s27
      %s33 = ssub.s32 %s19, %s31
      %s34 = sor.u32 %s32, %s33
      %p35 = scmp.eq.s32.totalorder %s34, 0
      %s37 = sadd.s32 %s36, 1
      %s38 = scalar_select %p35, %s36, %s37
      %p41 = pneg %p35
      %p42 = scmp.eq.s32.totalorder %s12, 1
      %p43 = por %p41, %p42
      %p44 = scmp.ne.s32.totalorder %s36, %s39
      %p45 = scmp.eq.s32.totalorder %s12, 0
      %p46 = por %p44, %p45
      %p47 = scmp.ne.s32.totalorder %s36, %s39
      %p48 = scmp.eq.s32.totalorder %s17, 1
      %p49 = por %p47, %p48
      %p50 = scmp.ne.s32.totalorder %s39, %s40
      %p51 = scmp.eq.s32.totalorder %s17, 0
      %p52 = por %p50, %p51
      %p53 = scmp.ne.s32.totalorder %s39, %s40
      %p54 = scmp.eq.s32.totalorder %s18, 1
      %p55 = por %p53, %p54
      %p57 = scmp.ne.s32.totalorder %s40, %s56
      %p58 = scmp.eq.s32.totalorder %s18, 0
      %p59 = por %p57, %p58
      %s61 = sadd.s32 %s60, 1
      %p64 = scmp.eq.s32.totalorder %s12, 1
      %p65 = scmp.ne.s32.totalorder %s60, %s62
      %p66 = scmp.eq.s32.totalorder %s12, 0
      %p67 = por %p65, %p66
      %p68 = scmp.ne.s32.totalorder %s60, %s62
      %p69 = scmp.eq.s32.totalorder %s17, 1
      %p70 = por %p68, %p69
      %p71 = scmp.ne.s32.totalorder %s62, %s63
      %p72 = scmp.eq.s32.totalorder %s17, 0
      %p73 = por %p71, %p72
      %p74 = scmp.ne.s32.totalorder %s62, %s63
      %p75 = scmp.eq.s32.totalorder %s18, 1
      %p76 = por %p74, %p75
      %p78 = scmp.ne.s32.totalorder %s63, %s77
      %p79 = scmp.eq.s32.totalorder %s18, 0
      %p80 = por %p78, %p79
      %s81 = ssub.s32 %s19, %s31
      %p82 = scmp.eq.s32.totalorder %s81, 0
      %s84 = sadd.s32 %s83, 1
      %s85 = scalar_select %p82, %s83, %s84
      %p88 = pneg %p82
      %p89 = scmp.eq.s32.totalorder %s12, 1
      %p90 = por %p88, %p89
      %p91 = scmp.ne.s32.totalorder %s83, %s86
      %p92 = scmp.eq.s32.totalorder %s12, 0
      %p93 = por %p91, %p92
      %p94 = scmp.ne.s32.totalorder %s83, %s86
      %p95 = scmp.eq.s32.totalorder %s17, 1
      %p96 = por %p94, %p95
      %p97 = scmp.ne.s32.totalorder %s86, %s87
      %p98 = scmp.eq.s32.totalorder %s17, 0
      %p99 = por %p97, %p98
      %p100 = scmp.ne.s32.totalorder %s86, %s87
      %p101 = scmp.eq.s32.totalorder %s18, 1
      %p102 = por %p100, %p101
      %p104 = scmp.ne.s32.totalorder %s87, %s103
      %p105 = scmp.eq.s32.totalorder %s18, 0
      %p106 = por %p104, %p105
      %s107 = ssub.s32 %s20, %s27
      %s108 = ssub.s32 %s19, %s31
      %s109 = sor.u32 %s107, %s108
      %p110 = scmp.eq.s32.totalorder %s109, 0
      %s112 = sadd.s32 %s111, 1
      %s113 = scalar_select %p110, %s111, %s112
      %p116 = pneg %p110
      %p117 = scmp.eq.s32.totalorder %s12, 1
      %p118 = por %p116, %p117
      %p119 = scmp.ne.s32.totalorder %s111, %s114
      %p120 = scmp.eq.s32.totalorder %s12, 0
      %p121 = por %p119, %p120
      %p122 = scmp.ne.s32.totalorder %s111, %s114
      %p123 = scmp.eq.s32.totalorder %s17, 1
      %p124 = por %p122, %p123
      %p125 = scmp.ne.s32.totalorder %s114, %s115
      %p126 = scmp.eq.s32.totalorder %s17, 0
      %p127 = por %p125, %p126
      %p128 = scmp.ne.s32.totalorder %s114, %s115
      %p129 = scmp.eq.s32.totalorder %s18, 1
      %p130 = por %p128, %p129
      %p132 = scmp.ne.s32.totalorder %s115, %s131
      %p133 = scmp.eq.s32.totalorder %s18, 0
      %p134 = por %p132, %p133
      %p135 = scmp.le.s32.totalorder 1, %s12
      %p136 = scmp.lt.s32.totalorder %s12, 3
      %p137 = pnand %p135, %p136
      %p138 = pneg %p137
      // Predicated region
      $region9: #{tpu_custom_call.1} parent=5 // pred_check
        _
      $region10: #{tpu_custom_call.1} parent=5 // pred_check_branch
        %140 = sbr.rel (%p137) target = $region12
      $region11: #{tpu_custom_call.1} parent=5 // pred_region
        %s141 = ssub.s32 %s12, 1
        // Predicated region
        $region13: #{tpu_custom_call.1} parent=11 // pred_check
          %p142 = pneg %p73
        $region14: #{tpu_custom_call.1} parent=11 // pred_check_branch
          %144 = sbr.rel (%p142) target = $region16
        $region15: #{tpu_custom_call.1} parent=11 // pred_region
          _
        $region16: #{tpu_custom_call.1} parent=11 // pred_fallthru
          _
        // Predicated region
        $region17: #{tpu_custom_call.1} parent=11 // pred_check
          %p145 = pneg %p99
        $region18: #{tpu_custom_call.1} parent=11 // pred_check_branch
          %147 = sbr.rel (%p145) target = $region20
        $region19: #{tpu_custom_call.1} parent=11 // pred_region
          %p148 = scmp.lt.s32.totalorder %s21, 0
          %s149 = scalar_select %p148, %s21, 0
          %s150 = smul.addr %s149, 4
          %s151 = scalar_lea.vmem %s2, %s150
        $region20: #{tpu_custom_call.1} parent=11 // pred_fallthru
          _
      $region12: #{tpu_custom_call.1} parent=5 // pred_fallthru
        _
      %p152 = scmp.lt.s32.totalorder %s12, 2
      // Predicated region
      $region21: #{tpu_custom_call.1} parent=5 // pred_check
        %p153 = pneg %p152
      $region22: #{tpu_custom_call.1} parent=5 // pred_check_branch
        %155 = sbr.rel (%p153) target = $region24
      $region23: #{tpu_custom_call.1} parent=5 // pred_region
        // Predicated region
        $region25: #{tpu_custom_call.1} parent=23 // pred_check
          %p156 = pneg %p46
        $region26: #{tpu_custom_call.1} parent=23 // pred_check_branch
          %158 = sbr.rel (%p156) target = $region28
        $region27: #{tpu_custom_call.1} parent=23 // pred_region
          %p159 = scmp.lt.s32.totalorder %s20, 1
          %s160 = scalar_select %p159, %s20, 1
          %p161 = scmp.lt.s32.totalorder %s19, 0
          %s162 = scalar_select %p161, %s19, 0
          %s163 = smul.addr %s162, 2
          %s164 = smul.addr %s160, 2
          %s165 = sadd.s32 %s163, %s164
          %s166 = smul.addr %s165, 2
          %s167 = scalar_lea.vmem %s0, %s166
        $region28: #{tpu_custom_call.1} parent=23 // pred_fallthru
          _
      $region24: #{tpu_custom_call.1} parent=5 // pred_fallthru
        _
      %p168 = scmp.le.s32.totalorder 1, %s12
      %p169 = scmp.lt.s32.totalorder %s12, 3
      %p170 = pnand %p168, %p169
      %p171 = pneg %p170
      // Predicated region
      $region29: #{tpu_custom_call.1} parent=5 // pred_check
        _
      $region30: #{tpu_custom_call.1} parent=5 // pred_check_branch
        %173 = sbr.rel (%p170) target = $region32
      $region31: #{tpu_custom_call.1} parent=5 // pred_region
        %s174 = ssub.s32 %s12, 1
        %p175 = scmp.lt.s32.totalorder %s22, 1
        %s176 = scalar_select %p175, %s22, 1
        %p177 = scmp.lt.s32.totalorder %s21, 0
        %s178 = scalar_select %p177, %s21, 0
        %s179 = smul.addr %s178, 2
        %s180 = smul.addr %s176, 2
        %s181 = sadd.s32 %s179, %s180
        %s182 = smul.addr %s181, 2
        %s183 = scalar_lea.vmem %s0, %s182
        %p184 = pneg %p52
        %p185 = pneg %p49
        %p186 = pneg %p73
        %p187 = pneg %p70
        %p188 = scmp.lt.s32.totalorder %s21, 0
        %s189 = scalar_select %p188, %s21, 0
        %s190 = smul.addr %s189, 4
        %s191 = scalar_lea.vmem %s2, %s190
        %p192 = pneg %p99
        %p193 = pneg %p96
        %p194 = pneg %p127
        %p195 = pneg %p124
        %s196 = sand.u32 %s114, 1
        %s197 = scalar_lea.sflag [#allocation3], %s196
        %s198 = sand.u32 %s114, 1
        %s199 = smul.addr %s198, 4
        %s200 = scalar_lea.vmem [#allocation2], %s199
        %p201 = scmp.lt.s32.totalorder %s22, 1
        %s202 = scalar_select %p201, %s22, 1
        %p203 = scmp.lt.s32.totalorder %s21, 0
        %s204 = scalar_select %p203, %s21, 0
        %s205 = smul.addr %s204, 2
        %s206 = smul.addr %s202, 2
        %s207 = sadd.s32 %s205, %s206
        %s208 = smul.addr %s207, 2
        %s209 = scalar_lea.vmem %s0, %s208
        %p210 = scmp.lt.s32.totalorder %s21, 0
        %s211 = scalar_select %p210, %s21, 0
        %s212 = smul.addr %s211, 4
        %s213 = scalar_lea.vmem %s2, %s212
        %v215 = vld [vmem:[%s209] sm:$0xf]
        %v216 = vld [vmem:[%s1] sm:$0xf]
        %v217 = vld [vmem:[%s1 + $0x4] sm:$0xf]
        %v218 = vld [vmem:[%s1 + $0x8] sm:$0xf]
        %v219 = vld [vmem:[%s1 + $0xc] sm:$0xf]
        %v220 = vld [vmem:[%s1 + $0x10] sm:$0xf]
        %v221 = vld [vmem:[%s1 + $0x14] sm:$0xf]
        %v222 = vld [vmem:[%s1 + $0x18] sm:$0xf]
        %v223 = vld [vmem:[%s1 + $0x1c] sm:$0xf]
        %v224 = vld [vmem:[%s1 + $0x20] sm:$0xf]
        %v225 = vld [vmem:[%s1 + $0x24] sm:$0xf]
        %v226 = vld [vmem:[%s1 + $0x28] sm:$0xf]
        %v227 = vld [vmem:[%s1 + $0x2c] sm:$0xf]
        %v228 = vld [vmem:[%s1 + $0x30] sm:$0xf]
        %v229 = vld [vmem:[%s1 + $0x34] sm:$0xf]
        %v230 = vld [vmem:[%s1 + $0x38] sm:$0xf]
        %v231 = vld [vmem:[%s1 + $0x3c] sm:$0xf]
        %v232 = vld [vmem:[%s1 + $0x40] sm:$0xf]
        %v233 = vld [vmem:[%s1 + $0x44] sm:$0xf]
        %v234 = vld [vmem:[%s1 + $0x48] sm:$0xf]
        %v235 = vld [vmem:[%s1 + $0x4c] sm:$0xf]
        %v236 = vld [vmem:[%s1 + $0x50] sm:$0xf]
        %v237 = vld [vmem:[%s1 + $0x54] sm:$0xf]
        %v238 = vld [vmem:[%s1 + $0x58] sm:$0xf]
        %v239 = vld [vmem:[%s1 + $0x5c] sm:$0xf]
        %v240 = vld [vmem:[%s1 + $0x60] sm:$0xf]
        %v241 = vld [vmem:[%s1 + $0x64] sm:$0xf]
        %v242 = vld [vmem:[%s1 + $0x68] sm:$0xf]
        %v243 = vld [vmem:[%s1 + $0x6c] sm:$0xf]
        %v244 = vld [vmem:[%s1 + $0x70] sm:$0xf]
        %v245 = vld [vmem:[%s1 + $0x74] sm:$0xf]
        %v246 = vld [vmem:[%s1 + $0x78] sm:$0xf]
        %v247 = vld [vmem:[%s1 + $0x7c] sm:$0xf]
        %v248 = vld [vmem:[%s213] sm:$0xf]
        %v251 = vunpack.c.l.s4 1983009808
        %v252 = vunpack.c.0.s8 %v251
        %v253 = vlaneseq
        %v254 = vshrl.u32 %v253, 7
        %v255 = vsub.s32 %v252, %v254
        %v256 = vrot.slane %v215, %v255
        %v257 = vcombine.high %v256, %v256
        %v292 = vunpack.c.l.b16 %v216
        %v293 = vunpack.c.l.b16 %v217
        %v294 = vunpack.c.l.b16 %v218
        %v295 = vunpack.c.l.b16 %v219
        %v296 = vunpack.c.l.b16 %v220
        %v297 = vunpack.c.l.b16 %v221
        %v298 = vunpack.c.l.b16 %v222
        %v299 = vunpack.c.l.b16 %v223
        %v300 = vunpack.c.l.b16 %v224
        %v301 = vunpack.c.l.b16 %v225
        %v302 = vunpack.c.l.b16 %v226
        %v303 = vunpack.c.l.b16 %v227
        %v304 = vunpack.c.l.b16 %v228
        %v305 = vunpack.c.l.b16 %v229
        %v306 = vunpack.c.l.b16 %v230
        %v307 = vunpack.c.l.b16 %v231
        %v308 = vunpack.c.l.b16 %v232
        %v309 = vunpack.c.l.b16 %v233
        %v310 = vunpack.c.l.b16 %v234
        %v311 = vunpack.c.l.b16 %v235
        %v312 = vunpack.c.l.b16 %v236
        %v313 = vunpack.c.l.b16 %v237
        %v314 = vunpack.c.l.b16 %v238
        %v315 = vunpack.c.l.b16 %v239
        %v316 = vunpack.c.l.b16 %v240
        %v317 = vunpack.c.l.b16 %v241
        %v318 = vunpack.c.l.b16 %v242
        %v319 = vunpack.c.l.b16 %v243
        %v320 = vunpack.c.l.b16 %v244
        %v321 = vunpack.c.l.b16 %v245
        %v322 = vunpack.c.l.b16 %v246
        %v323 = vunpack.c.l.b16 %v247
        %v324 = vpack.c.b16 %v293, %v292
        %v325 = vpack.c.b16 %v295, %v294
        %v326 = vpack.c.b16 %v297, %v296
        %v327 = vpack.c.b16 %v299, %v298
        %v328 = vpack.c.b16 %v301, %v300
        %v329 = vpack.c.b16 %v303, %v302
        %v330 = vpack.c.b16 %v305, %v304
        %v331 = vpack.c.b16 %v307, %v306
        %v332 = vpack.c.b16 %v309, %v308
        %v333 = vpack.c.b16 %v311, %v310
        %v334 = vpack.c.b16 %v313, %v312
        %v335 = vpack.c.b16 %v315, %v314
        %v336 = vpack.c.b16 %v317, %v316
        %v337 = vpack.c.b16 %v319, %v318
        %v338 = vpack.c.b16 %v321, %v320
        %v339 = vpack.c.b16 %v323, %v322
        %356 = vmatprep.subr.bf16.mxu0 0
        %357 = vmatpush1.bf16.msra.mxu0 %v331
        %358 = vmatprep.subr.bf16.mxu0 0
        %359 = vmatpush1.bf16.msra.mxu0 %v330
        %360 = vmatprep.subr.bf16.mxu0 0
        %361 = vmatpush1.bf16.msra.mxu0 %v329
        %362 = vmatprep.subr.bf16.mxu0 0
        %363 = vmatpush1.bf16.msra.mxu0 %v328
        %364 = vmatprep.subr.bf16.mxu0 0
        %365 = vmatpush1.bf16.msra.mxu0 %v327
        %366 = vmatprep.subr.bf16.mxu0 0
        %367 = vmatpush1.bf16.msra.mxu0 %v326
        %368 = vmatprep.subr.bf16.mxu0 0
        %369 = vmatpush1.bf16.msra.mxu0 %v325
        %370 = vmatprep.subr.bf16.mxu0 0
        %371 = vmatpush1.bf16.msra.mxu0 %v324
        %372 = vmatprep.subr.bf16.mxu0 0
        %373 = vmatpush2.bf16.msra.mxu0 %v339
        %374 = vmatprep.subr.bf16.mxu0 0
        %375 = vmatpush2.bf16.msra.mxu0 %v338
        %376 = vmatprep.subr.bf16.mxu0 0
        %377 = vmatpush2.bf16.msra.mxu0 %v337
        %378 = vmatprep.subr.bf16.mxu0 0
        %379 = vmatpush2.bf16.msra.mxu0 %v336
        %380 = vmatprep.subr.bf16.mxu0 0
        %381 = vmatpush2.bf16.msra.mxu0 %v335
        %382 = vmatprep.subr.bf16.mxu0 0
        %383 = vmatpush2.bf16.msra.mxu0 %v334
        %384 = vmatprep.subr.bf16.mxu0 0
        %385 = vmatpush2.bf16.msra.mxu0 %v333
        %386 = vmatprep.subr.bf16.mxu0 0
        %387 = vmatpush2.bf16.msra.mxu0 %v332
        %388 = vmatprep.mubr.bf16.mxu0 %v257
        %389 = vmatmul.mubr.bf16.gmra.mxu0 %v256
        %v390 = vpop.f32.mrf.mxu0
        %v391 = vadd.f32 %v248, %v390
        %v392 = vpop.f32.mrf.mxu0
        %v393 = vpop.f32.mrf.mxu0
        %v394 = vpop.f32.mrf.mxu0
        %395 = vdwg.mxu0
        %vm396 = vcmask 257024
        %397 = vst.msk [vmem:[%s200] sm:$0xf] %vm396, %v391
        %s398 = sand.u32 %s114, 1
        %s399 = scalar_lea.sflag [#allocation3], %s398
        %s400 = sand.u32 %s114, 1
        %s401 = smul.addr %s400, 4
        %s402 = scalar_lea.vmem [#allocation2], %s401
        // Predicated region
        $region33: #{tpu_custom_call.1} parent=31 // pred_check
          %p403 = pneg %p124
        $region34: #{tpu_custom_call.1} parent=31 // pred_check_branch
          %405 = sbr.rel (%p403) target = $region36
        $region35: #{tpu_custom_call.1} parent=31 // pred_region
          %s407 = ssub.s32 64, 64
          %408 = vsyncadd %s399, %s407
          %s409 = sadd.s32 %s21, %s22
          %s410 = smul.addr %s409, 64
          %s411 = scalar_lea.hbm %s3, %s410
          %s413 = sshll.u32 %s402, 4
          %s414 = int_to_ptr.vmem [resolvable:$true] %s413
          %416 = dma.vmem_to_hbm [thread:$0]  %s414, 64, %s411, %s399
        $region36: #{tpu_custom_call.1} parent=31 // pred_fallthru
          _
      $region32: #{tpu_custom_call.1} parent=5 // pred_fallthru
        _
      %p417 = scmp.le.s32.totalorder 2, %s12
      // Predicated region
      $region37: #{tpu_custom_call.1} parent=5 // pred_check
        %p418 = pneg %p417
      $region38: #{tpu_custom_call.1} parent=5 // pred_check_branch
        %420 = sbr.rel (%p418) target = $region40
      $region39: #{tpu_custom_call.1} parent=5 // pred_region
        %s421 = ssub.s32 %s12, 2
        // Predicated region
        $region41: #{tpu_custom_call.1} parent=39 // pred_check
          %p422 = pneg %p130
        $region42: #{tpu_custom_call.1} parent=39 // pred_check_branch
          %424 = sbr.rel (%p422) target = $region44
        $region43: #{tpu_custom_call.1} parent=39 // pred_region
          %s425 = sand.u32 %s115, 1
          %s426 = scalar_lea.sflag [#allocation3], %s425
          %s427 = sand.u32 %s115, 1
          %s428 = smul.addr %s427, 4
          %s429 = scalar_lea.vmem [#allocation2], %s428
          %430 = dma.done %s426, 64
        $region44: #{tpu_custom_call.1} parent=39 // pred_fallthru
          _
      $region40: #{tpu_custom_call.1} parent=5 // pred_fallthru
        _
    $region6: #{tpu_custom_call.1} parent=1 // loop_footer
      %s16 = sadd.s32 1, %s12
    $region7: #{tpu_custom_call.1} parent=1 // loop_footer_branch
      %11 = sbr.rel target = $region3
    $region8: #{tpu_custom_call.1} parent=1 // loop_exit
      _
    %431 = vsyncpa [#allocation3], 1
    %s432 = scalar_lea.sflag [#allocation3], 1
    %433 = vsyncpa %s432, 1

</llo_original>
